<compile_context>
chip_gen: v7x
topology: tpu7x:2x2x1
jax: 0.10.0
libtpu: 0.0.40
codegen_flags: <defaults>
</compile_context>

<pallas_src>
import functools

import jax
import jax.numpy as jnp
from jax.experimental import pallas as pl
from jax.experimental.pallas import tpu as pltpu


def _decomp_kernel_packed(x_ref, res_ref, mean_ref, *, feat, kernel_size,
                          pad_left, pad_right):
    """Lane-packed tile: (TM, 128); each 128-lane row holds 128//feat independent
    length-`feat` segments. Window runs inside each segment. Exact f32 math:
    XLU rolls for the shifts, VPU selects for the replication-pad clamping."""
    x = x_ref[...].astype(jnp.float32)                       # (TM, 128)
    lanes = jax.lax.broadcasted_iota(jnp.int32, x.shape, dimension=1)
    f_idx = jnp.bitwise_and(lanes, feat - 1)                 # feat is a power of 2

    # Segment-edge broadcasts: first_b[l] = x[segment start], last_b[l] = x[segment end],
    # built with log2(feat) roll+select steps (no cross-segment leakage).
    first_b = x
    last_b = x
    s = 1
    while s < feat:
        first_b = jnp.where(jnp.bitwise_and(f_idx, s) != 0,
                            pltpu.roll(first_b, shift=s, axis=1), first_b)
        last_b = jnp.where(jnp.bitwise_and(f_idx, s) == 0,
                           pltpu.roll(last_b, shift=(128 - s) % 128, axis=1), last_b)
        s *= 2

    acc = x                                                  # window offset d == 0
    for d in range(1, pad_right + 1):                        # offsets +d (clamp right)
        if d < feat:
            shifted = pltpu.roll(x, shift=(128 - d) % 128, axis=1)   # == roll by -d
            acc = acc + jnp.where(f_idx < feat - d, shifted, last_b)
        else:
            acc = acc + last_b
    for d in range(1, pad_left + 1):                         # offsets -d (clamp left)
        if d < feat:
            shifted = pltpu.roll(x, shift=d, axis=1)
            acc = acc + jnp.where(f_idx >= d, shifted, first_b)
        else:
            acc = acc + first_b

    mean = acc * (1.0 / float(kernel_size))
    mean_ref[...] = mean.astype(mean_ref.dtype)
    res_ref[...] = (x - mean).astype(res_ref.dtype)


def _decomp_kernel_general(x_ref, res_ref, mean_ref, *, kernel_size,
                           pad_left, pad_right):
    """Fallback for feature dims that don't lane-pack: (TM, F) row tiles,
    in-register replication pad + kernel_size shifted slices (known-good path)."""
    x = x_ref[...].astype(jnp.float32)                       # (TM, F)
    tm, feat = x.shape

    pieces = []
    if pad_left > 0:
        pieces.append(jnp.broadcast_to(x[:, :1], (tm, pad_left)))
    pieces.append(x)
    if pad_right > 0:
        pieces.append(jnp.broadcast_to(x[:, feat - 1:feat], (tm, pad_right)))
    xp = jnp.concatenate(pieces, axis=-1) if len(pieces) > 1 else x

    acc = xp[:, 0:feat]
    for j in range(1, kernel_size):
        acc = acc + xp[:, j:j + feat]

    mean = acc * (1.0 / float(kernel_size))
    mean_ref[...] = mean.astype(mean_ref.dtype)
    res_ref[...] = (x - mean).astype(res_ref.dtype)


def _pick_block_rows(n_rows, width_elems, *, target_bytes=2 << 20, max_rows=8192):
    """Row tile: multiple of 8, ~2 MiB of f32 per input tile, and >= 2 grid steps
    whenever the row count allows (pipelining + TensorCore sharding on v7x)."""
    if n_rows <= 8:
        return n_rows                                        # single full-extent block
    rows = target_bytes // max(1, width_elems * 4)
    rows = max(8, min(max_rows, (rows // 8) * 8))
    half = (((n_rows + 1) // 2) + 7) // 8 * 8                # ceil(n/2), rounded up to 8
    return min(rows, half)


def _vmem_limit_bytes():
    """Generation-aware scoped-VMEM limit: ~3/4 of physical VMEM, capped at 96 MiB
    (v5e/v6e have 128 MiB, v7x only 64 MiB). Safe 48 MiB default if query fails."""
    default = 48 * 1024 * 1024
    try:
        cap = getattr(pltpu.get_tpu_info(), "vmem_capacity_bytes", None)
        if cap:
            return int(min(96 * 1024 * 1024, max(default, (int(cap) * 3) // 4)))
    except Exception:
        pass
    return default


def series_decomposition(x, kernel_size: int, *, block_rows=None):
    """Pallas implementation of SeriesDecomposition.forward.

    Args:
        x: jnp array [B, S, F] (bs, seq_len, features)
        kernel_size: moving-average window size
    Returns:
        (residual, moving_mean), both [B, S, F], dtype of x.
    """
    if x.ndim != 3:
        raise ValueError("expected [bs, seq_len, features]")
    if kernel_size < 1:
        raise ValueError("kernel_size must be >= 1")
    B, S, F = x.shape
    N = B * S
    pad_left = (kernel_size - 1) // 2
    pad_right = kernel_size - 1 - pad_left
    itemsize = jnp.dtype(x.dtype).itemsize

    # Lane-packed path: F divides 128 and rows pack evenly into 128-lane rows.
    packed = (F <= 128) and (128 % F == 0) and ((N * F) % 128 == 0)
    if packed:
        width = 128
        n_rows = (N * F) // 128
        kernel = functools.partial(_decomp_kernel_packed, feat=F,
                                   kernel_size=kernel_size,
                                   pad_left=pad_left, pad_right=pad_right)
    else:
        width = F
        n_rows = N
        kernel = functools.partial(_decomp_kernel_general,
                                   kernel_size=kernel_size,
                                   pad_left=pad_left, pad_right=pad_right)

    x2 = x.reshape(n_rows, width)                            # free contiguous reshape

    if block_rows is None:
        tm = _pick_block_rows(n_rows, width)
    else:
        tm = min(block_rows, n_rows)
        if tm != n_rows:
            tm = max(8, (tm // 8) * 8)

    grid = (pl.cdiv(n_rows, tm),)
    spec = pl.BlockSpec((tm, width), lambda i: (i, 0))
    out_shapes = (
        jax.ShapeDtypeStruct((n_rows, width), x.dtype),      # residual
        jax.ShapeDtypeStruct((n_rows, width), x.dtype),      # moving_mean
    )

    cost = pl.CostEstimate(
        flops=int(N * F * (kernel_size + 1)),
        transcendentals=0,
        bytes_accessed=int(3 * N * F * itemsize))

    residual, moving_mean = pl.pallas_call(
        kernel,
        grid=grid,
        in_specs=[spec],
        out_specs=(spec, spec),
        out_shape=out_shapes,
        compiler_params=pltpu.CompilerParams(
            dimension_semantics=("parallel",),
            vmem_limit_bytes=_vmem_limit_bytes()),
        cost_estimate=cost,
    )(x2)

    return residual.reshape(B, S, F), moving_mean.reshape(B, S, F)


def _reference(x, kernel_size):
    """Pure-JAX reference matching PyTorch ReplicationPad1d + AvgPool1d."""
    pad_left = (kernel_size - 1) // 2
    F = x.shape[-1]
    idx = jnp.clip(
        jnp.arange(F)[:, None] + jnp.arange(kernel_size)[None, :] - pad_left,
        0, F - 1)
    gathered = x[..., idx]                                   # [B, S, F, k]
    mean = gathered.mean(axis=-1).astype(x.dtype)
    return x - mean, mean


if __name__ == "__main__":
    key = jax.random.PRNGKey(0)
    configs = [
        # (B, S, F, kernel_size)
        (2, 1024, 16, 7),   # lane-packed path (8 segments/row), 2-step grid, odd k
        (2, 8, 16, 4),      # tiny packed input, even kernel (asymmetric replication pad)
        (1, 16, 128, 25),   # packed, full-width segments (g=1), large window
        (2, 32, 24, 5),     # fallback path: F does not divide 128
    ]
    for (B, S, F, k) in configs:
        key, sub = jax.random.split(key)
        x = jax.random.normal(sub, (B, S, F), dtype=jnp.float32)

        residual, moving_mean = series_decomposition(x, k)
        residual = jax.block_until_ready(residual)
        moving_mean = jax.block_until_ready(moving_mean)

        ref_res, ref_mean = _reference(x, k)
        assert residual.shape == (B, S, F) and moving_mean.shape == (B, S, F)
        assert jnp.allclose(moving_mean, ref_mean, atol=1e-5, rtol=1e-4), (B, S, F, k)
        assert jnp.allclose(residual, ref_res, atol=1e-5, rtol=1e-4), (B, S, F, k)

    print("KERNEL_OK")
</pallas_src>

<mosaic_0001>
module attributes {stable_mosaic.version = 11 : i64} {
  func.func @_decomp_kernel_packed(%arg0: i32, %arg1: memref<128x128xf32, #tpu.memory_space<vmem>>, %arg2: memref<128x128xf32, #tpu.memory_space<vmem>>, %arg3: memref<128x128xf32, #tpu.memory_space<vmem>>) attributes {dimension_semantics = [#tpu.dimension_semantics<parallel>], iteration_bounds = array<i64: 2>, scalar_prefetch = 0 : i64, scratch_operands = 0 : i64, tpu.core_type = #tpu.core_type<tc>, window_params = [{transform_indices = @transform_0, window_bounds = array<i64: 128, 128>}, {transform_indices = @transform_1, window_bounds = array<i64: 128, 128>}, {transform_indices = @transform_2, window_bounds = array<i64: 128, 128>}]} {
    %c0 = arith.constant 0 : index
    %c0_0 = arith.constant 0 : index
    %0 = vector.load %arg1[%c0, %c0_0] : memref<128x128xf32, #tpu.memory_space<vmem>>, vector<128x128xf32>
    %1 = tpu.iota {dimensions = array<i32: 1>} : vector<128x128xi32>
    %c15_i32 = arith.constant 15 : i32
    %2 = vector.broadcast %c15_i32 : i32 to vector<128x128xi32>
    %3 = arith.andi %1, %2 : vector<128x128xi32>
    %c1_i32 = arith.constant 1 : i32
    %4 = vector.broadcast %c1_i32 : i32 to vector<128x128xi32>
    %5 = arith.andi %3, %4 : vector<128x128xi32>
    %c0_i32 = arith.constant 0 : i32
    %6 = vector.broadcast %c0_i32 : i32 to vector<128x128xi32>
    %7 = arith.cmpi ne, %5, %6 : vector<128x128xi32>
    %c1_i32_1 = arith.constant 1 : i32
    %8 = tpu.dynamic_rotate %0 by %c1_i32_1 dim 1 : vector<128x128xf32>, i32 -> vector<128x128xf32>
    %9 = arith.select %7, %8, %0 : vector<128x128xi1>, vector<128x128xf32>
    %c1_i32_2 = arith.constant 1 : i32
    %10 = vector.broadcast %c1_i32_2 : i32 to vector<128x128xi32>
    %11 = arith.andi %3, %10 : vector<128x128xi32>
    %c0_i32_3 = arith.constant 0 : i32
    %12 = vector.broadcast %c0_i32_3 : i32 to vector<128x128xi32>
    %13 = arith.cmpi eq, %11, %12 : vector<128x128xi32>
    %c127_i32 = arith.constant 127 : i32
    %14 = tpu.dynamic_rotate %0 by %c127_i32 dim 1 : vector<128x128xf32>, i32 -> vector<128x128xf32>
    %15 = arith.select %13, %14, %0 : vector<128x128xi1>, vector<128x128xf32>
    %c2_i32 = arith.constant 2 : i32
    %16 = vector.broadcast %c2_i32 : i32 to vector<128x128xi32>
    %17 = arith.andi %3, %16 : vector<128x128xi32>
    %c0_i32_4 = arith.constant 0 : i32
    %18 = vector.broadcast %c0_i32_4 : i32 to vector<128x128xi32>
    %19 = arith.cmpi ne, %17, %18 : vector<128x128xi32>
    %c2_i32_5 = arith.constant 2 : i32
    %20 = tpu.dynamic_rotate %9 by %c2_i32_5 dim 1 : vector<128x128xf32>, i32 -> vector<128x128xf32>
    %21 = arith.select %19, %20, %9 : vector<128x128xi1>, vector<128x128xf32>
    %c2_i32_6 = arith.constant 2 : i32
    %22 = vector.broadcast %c2_i32_6 : i32 to vector<128x128xi32>
    %23 = arith.andi %3, %22 : vector<128x128xi32>
    %c0_i32_7 = arith.constant 0 : i32
    %24 = vector.broadcast %c0_i32_7 : i32 to vector<128x128xi32>
    %25 = arith.cmpi eq, %23, %24 : vector<128x128xi32>
    %c126_i32 = arith.constant 126 : i32
    %26 = tpu.dynamic_rotate %15 by %c126_i32 dim 1 : vector<128x128xf32>, i32 -> vector<128x128xf32>
    %27 = arith.select %25, %26, %15 : vector<128x128xi1>, vector<128x128xf32>
    %c4_i32 = arith.constant 4 : i32
    %28 = vector.broadcast %c4_i32 : i32 to vector<128x128xi32>
    %29 = arith.andi %3, %28 : vector<128x128xi32>
    %c0_i32_8 = arith.constant 0 : i32
    %30 = vector.broadcast %c0_i32_8 : i32 to vector<128x128xi32>
    %31 = arith.cmpi ne, %29, %30 : vector<128x128xi32>
    %c4_i32_9 = arith.constant 4 : i32
    %32 = tpu.dynamic_rotate %21 by %c4_i32_9 dim 1 : vector<128x128xf32>, i32 -> vector<128x128xf32>
    %33 = arith.select %31, %32, %21 : vector<128x128xi1>, vector<128x128xf32>
    %c4_i32_10 = arith.constant 4 : i32
    %34 = vector.broadcast %c4_i32_10 : i32 to vector<128x128xi32>
    %35 = arith.andi %3, %34 : vector<128x128xi32>
    %c0_i32_11 = arith.constant 0 : i32
    %36 = vector.broadcast %c0_i32_11 : i32 to vector<128x128xi32>
    %37 = arith.cmpi eq, %35, %36 : vector<128x128xi32>
    %c124_i32 = arith.constant 124 : i32
    %38 = tpu.dynamic_rotate %27 by %c124_i32 dim 1 : vector<128x128xf32>, i32 -> vector<128x128xf32>
    %39 = arith.select %37, %38, %27 : vector<128x128xi1>, vector<128x128xf32>
    %c8_i32 = arith.constant 8 : i32
    %40 = vector.broadcast %c8_i32 : i32 to vector<128x128xi32>
    %41 = arith.andi %3, %40 : vector<128x128xi32>
    %c0_i32_12 = arith.constant 0 : i32
    %42 = vector.broadcast %c0_i32_12 : i32 to vector<128x128xi32>
    %43 = arith.cmpi ne, %41, %42 : vector<128x128xi32>
    %c8_i32_13 = arith.constant 8 : i32
    %44 = tpu.dynamic_rotate %33 by %c8_i32_13 dim 1 : vector<128x128xf32>, i32 -> vector<128x128xf32>
    %45 = arith.select %43, %44, %33 : vector<128x128xi1>, vector<128x128xf32>
    %c8_i32_14 = arith.constant 8 : i32
    %46 = vector.broadcast %c8_i32_14 : i32 to vector<128x128xi32>
    %47 = arith.andi %3, %46 : vector<128x128xi32>
    %c0_i32_15 = arith.constant 0 : i32
    %48 = vector.broadcast %c0_i32_15 : i32 to vector<128x128xi32>
    %49 = arith.cmpi eq, %47, %48 : vector<128x128xi32>
    %c120_i32 = arith.constant 120 : i32
    %50 = tpu.dynamic_rotate %39 by %c120_i32 dim 1 : vector<128x128xf32>, i32 -> vector<128x128xf32>
    %51 = arith.select %49, %50, %39 : vector<128x128xi1>, vector<128x128xf32>
    %c127_i32_16 = arith.constant 127 : i32
    %52 = tpu.dynamic_rotate %0 by %c127_i32_16 dim 1 : vector<128x128xf32>, i32 -> vector<128x128xf32>
    %c15_i32_17 = arith.constant 15 : i32
    %53 = vector.broadcast %c15_i32_17 : i32 to vector<128x128xi32>
    %54 = arith.cmpi slt, %3, %53 : vector<128x128xi32>
    %55 = arith.select %54, %52, %51 : vector<128x128xi1>, vector<128x128xf32>
    %56 = arith.addf %0, %55 : vector<128x128xf32>
    %c126_i32_18 = arith.constant 126 : i32
    %57 = tpu.dynamic_rotate %0 by %c126_i32_18 dim 1 : vector<128x128xf32>, i32 -> vector<128x128xf32>
    %c14_i32 = arith.constant 14 : i32
    %58 = vector.broadcast %c14_i32 : i32 to vector<128x128xi32>
    %59 = arith.cmpi slt, %3, %58 : vector<128x128xi32>
    %60 = arith.select %59, %57, %51 : vector<128x128xi1>, vector<128x128xf32>
    %61 = arith.addf %56, %60 : vector<128x128xf32>
    %c125_i32 = arith.constant 125 : i32
    %62 = tpu.dynamic_rotate %0 by %c125_i32 dim 1 : vector<128x128xf32>, i32 -> vector<128x128xf32>
    %c13_i32 = arith.constant 13 : i32
    %63 = vector.broadcast %c13_i32 : i32 to vector<128x128xi32>
    %64 = arith.cmpi slt, %3, %63 : vector<128x128xi32>
    %65 = arith.select %64, %62, %51 : vector<128x128xi1>, vector<128x128xf32>
    %66 = arith.addf %61, %65 : vector<128x128xf32>
    %c1_i32_19 = arith.constant 1 : i32
    %67 = tpu.dynamic_rotate %0 by %c1_i32_19 dim 1 : vector<128x128xf32>, i32 -> vector<128x128xf32>
    %c1_i32_20 = arith.constant 1 : i32
    %68 = vector.broadcast %c1_i32_20 : i32 to vector<128x128xi32>
    %69 = arith.cmpi sge, %3, %68 : vector<128x128xi32>
    %70 = arith.select %69, %67, %45 : vector<128x128xi1>, vector<128x128xf32>
    %71 = arith.addf %66, %70 : vector<128x128xf32>
    %c2_i32_21 = arith.constant 2 : i32
    %72 = tpu.dynamic_rotate %0 by %c2_i32_21 dim 1 : vector<128x128xf32>, i32 -> vector<128x128xf32>
    %c2_i32_22 = arith.constant 2 : i32
    %73 = vector.broadcast %c2_i32_22 : i32 to vector<128x128xi32>
    %74 = arith.cmpi sge, %3, %73 : vector<128x128xi32>
    %75 = arith.select %74, %72, %45 : vector<128x128xi1>, vector<128x128xf32>
    %76 = arith.addf %71, %75 : vector<128x128xf32>
    %c3_i32 = arith.constant 3 : i32
    %77 = tpu.dynamic_rotate %0 by %c3_i32 dim 1 : vector<128x128xf32>, i32 -> vector<128x128xf32>
    %c3_i32_23 = arith.constant 3 : i32
    %78 = vector.broadcast %c3_i32_23 : i32 to vector<128x128xi32>
    %79 = arith.cmpi sge, %3, %78 : vector<128x128xi32>
    %80 = arith.select %79, %77, %45 : vector<128x128xi1>, vector<128x128xf32>
    %81 = arith.addf %76, %80 : vector<128x128xf32>
    %cst = arith.constant 0.142857149 : f32
    %82 = vector.broadcast %cst : f32 to vector<128x128xf32>
    %83 = arith.mulf %81, %82 : vector<128x128xf32>
    %c0_24 = arith.constant 0 : index
    %c0_25 = arith.constant 0 : index
    %84 = vector.load %arg3[%c0_24, %c0_25] : memref<128x128xf32, #tpu.memory_space<vmem>>, vector<128x128xf32>
    tpu.vector_store %arg3[%c0_24, %c0_25], %83 {strides = array<i32>} : memref<128x128xf32, #tpu.memory_space<vmem>>, vector<128x128xf32>,
    %85 = arith.subf %0, %83 : vector<128x128xf32>
    %c0_26 = arith.constant 0 : index
    %c0_27 = arith.constant 0 : index
    %86 = vector.load %arg2[%c0_26, %c0_27] : memref<128x128xf32, #tpu.memory_space<vmem>>, vector<128x128xf32>
    tpu.vector_store %arg2[%c0_26, %c0_27], %85 {strides = array<i32>} : memref<128x128xf32, #tpu.memory_space<vmem>>, vector<128x128xf32>,
    return
  }
  func.func @transform_0(%arg0: i32) -> (i32, i32) {
    %c0_i32 = arith.constant 0 : i32
    %c0_i32_0 = arith.constant 0 : i32
    return %arg0, %c0_i32 : i32, i32
  }
  func.func @transform_1(%arg0: i32) -> (i32, i32) {
    %c0_i32 = arith.constant 0 : i32
    %c0_i32_0 = arith.constant 0 : i32
    return %arg0, %c0_i32 : i32, i32
  }
  func.func @transform_2(%arg0: i32) -> (i32, i32) {
    %c0_i32 = arith.constant 0 : i32
    %c0_i32_0 = arith.constant 0 : i32
    return %arg0, %c0_i32 : i32, i32
  }
}

</mosaic_0001>

<llo_original>
// kernel: tpu_custom_call.1
$region0: #{tpu_custom_call.1}
  #allocation0 [shape = 'u32[]', space=smem, size = 0x4, offset = 0x4, fixed_abs, tag = 'smem constant byte address 0x4 - core index']
  #allocation1 [shape = 'u32[144,128]{1,0:T(1,128)}', space=vmem, size = 0x12000, scoped, tag = 'internal scratch']
  %s0 = inlined_call_operand.hbm [shape: f32[256,128], index: 0, kind: input, shape index: {}]
  %s1 = inlined_call_operand.hbm [shape: f32[256,128], index: 1, kind: output, shape index: {0}]
  %s2 = inlined_call_operand.hbm [shape: f32[256,128], index: 2, kind: output, shape index: {1}]
  %3 = xla_tuple %s1, %s2
  %s4 = sld [smem:[#allocation0]]
  $region49: #{tpu_custom_call.1} parent=0
    _
  %s6 = ssub.s32 1, %s4
  %s7 = scalar_select 0, %s6, %s4
  $region1: #{tpu_custom_call.1} parent=0
    #allocation2 [shape = 'u8[131072]{0}', space=vmem, size = 0x20000, scoped, tag = 'input window, operand 0']
    #allocation3 [shape = 's32[2]{0}', space=sflag, size = 0x8, scoped, tag = 'scoped memory for tpu_custom_call.1']
    #allocation4 [shape = 's32[2]{0}', space=sflag, size = 0x8, scoped, tag = 'scoped memory for tpu_custom_call.1']
    #allocation5 [shape = 'u8[131072]{0}', space=vmem, size = 0x20000, scoped, tag = 'output window, operand 0']
    #allocation6 [shape = 'u8[131072]{0}', space=vmem, size = 0x20000, scoped, tag = 'output window, operand 1']
    #allocation7 [shape = 's32[2]{0}', space=sflag, size = 0x8, scoped, tag = 'scoped memory for tpu_custom_call.1']
    %8 = vsyncpa [#allocation3], 0
    %s9 = scalar_lea.sflag [#allocation3], 1
    %10 = vsyncpa %s9, 0
    %11 = vsyncpa [#allocation4], 0
    %s12 = scalar_lea.sflag [#allocation4], 1
    %13 = vsyncpa %s12, 0
    %14 = vsyncpa [#allocation7], 0
    %s15 = scalar_lea.sflag [#allocation7], 1
    %16 = vsyncpa %s15, 0
    loop: start=0, step=1, limit=4
    $region2: #{tpu_custom_call.1} parent=1 // loop_pre_header
      _
    $region3: #{tpu_custom_call.1} parent=1 // loop_header
      %s18 = sphi 0, %s22
      %p19 = scmp.ge.s32.totalorder %s18, 4
      %s28 = sphi 0, %s30
      %s31 = sphi 0, %s28
      %s32 = sphi 0, %s31
      %s48 = sphi 0, %s32
      %s54 = sphi 0, %s56
      %s57 = sphi 0, %s54
      %s58 = sphi 0, %s57
      %s74 = sphi 0, %s58
      %s80 = sphi 0, %s82
      %s83 = sphi 0, %s80
      %s84 = sphi 0, %s83
      %s100 = sphi 0, %s84
    $region4: #{tpu_custom_call.1} parent=1 // loop_header_branch
      %21 = sbr.rel (%p19) target = $region8
    $region5: #{tpu_custom_call.1} parent=1 // loop_body
      %s23 = ssub.s32 %s18, 1
      %s24 = ssub.s32 %s18, 2
      %s25 = sadd.s32 %s18, 1
      %s26 = ssub.s32 %s18, %s25
      %p27 = scmp.eq.s32.totalorder %s26, 0
      %s29 = sadd.s32 %s28, 1
      %s30 = scalar_select %p27, %s28, %s29
      %p33 = pneg %p27
      %p34 = scmp.eq.s32.totalorder %s18, 1
      %p35 = por %p33, %p34
      %p36 = scmp.ne.s32.totalorder %s28, %s31
      %p37 = scmp.eq.s32.totalorder %s18, 0
      %p38 = por %p36, %p37
      %p39 = scmp.ne.s32.totalorder %s28, %s31
      %p40 = scmp.eq.s32.totalorder %s23, 1
      %p41 = por %p39, %p40
      %p42 = scmp.ne.s32.totalorder %s31, %s32
      %p43 = scmp.eq.s32.totalorder %s23, 0
      %p44 = por %p42, %p43
      %p45 = scmp.ne.s32.totalorder %s31, %s32
      %p46 = scmp.eq.s32.totalorder %s24, 1
      %p47 = por %p45, %p46
      %p49 = scmp.ne.s32.totalorder %s32, %s48
      %p50 = scmp.eq.s32.totalorder %s24, 0
      %p51 = por %p49, %p50
      %s52 = ssub.s32 %s18, %s25
      %p53 = scmp.eq.s32.totalorder %s52, 0
      %s55 = sadd.s32 %s54, 1
      %s56 = scalar_select %p53, %s54, %s55
      %p59 = pneg %p53
      %p60 = scmp.eq.s32.totalorder %s18, 1
      %p61 = por %p59, %p60
      %p62 = scmp.ne.s32.totalorder %s54, %s57
      %p63 = scmp.eq.s32.totalorder %s18, 0
      %p64 = por %p62, %p63
      %p65 = scmp.ne.s32.totalorder %s54, %s57
      %p66 = scmp.eq.s32.totalorder %s23, 1
      %p67 = por %p65, %p66
      %p68 = scmp.ne.s32.totalorder %s57, %s58
      %p69 = scmp.eq.s32.totalorder %s23, 0
      %p70 = por %p68, %p69
      %p71 = scmp.ne.s32.totalorder %s57, %s58
      %p72 = scmp.eq.s32.totalorder %s24, 1
      %p73 = por %p71, %p72
      %p75 = scmp.ne.s32.totalorder %s58, %s74
      %p76 = scmp.eq.s32.totalorder %s24, 0
      %p77 = por %p75, %p76
      %s78 = ssub.s32 %s18, %s25
      %p79 = scmp.eq.s32.totalorder %s78, 0
      %s81 = sadd.s32 %s80, 1
      %s82 = scalar_select %p79, %s80, %s81
      %p85 = pneg %p79
      %p86 = scmp.eq.s32.totalorder %s18, 1
      %p87 = por %p85, %p86
      %p88 = scmp.ne.s32.totalorder %s80, %s83
      %p89 = scmp.eq.s32.totalorder %s18, 0
      %p90 = por %p88, %p89
      %p91 = scmp.ne.s32.totalorder %s80, %s83
      %p92 = scmp.eq.s32.totalorder %s23, 1
      %p93 = por %p91, %p92
      %p94 = scmp.ne.s32.totalorder %s83, %s84
      %p95 = scmp.eq.s32.totalorder %s23, 0
      %p96 = por %p94, %p95
      %p97 = scmp.ne.s32.totalorder %s83, %s84
      %p98 = scmp.eq.s32.totalorder %s24, 1
      %p99 = por %p97, %p98
      %p101 = scmp.ne.s32.totalorder %s84, %s100
      %p102 = scmp.eq.s32.totalorder %s24, 0
      %p103 = por %p101, %p102
      %p104 = scmp.le.s32.totalorder 1, %s18
      %p105 = scmp.lt.s32.totalorder %s18, 3
      %p106 = pnand %p104, %p105
      %p107 = pneg %p106
      // Predicated region
      $region9: #{tpu_custom_call.1} parent=5 // pred_check
        _
      $region10: #{tpu_custom_call.1} parent=5 // pred_check_branch
        %109 = sbr.rel (%p106) target = $region12
      $region11: #{tpu_custom_call.1} parent=5 // pred_region
        %s110 = ssub.s32 %s18, 1
      $region12: #{tpu_custom_call.1} parent=5 // pred_fallthru
        _
      %p111 = scmp.lt.s32.totalorder %s18, 2
      // Predicated region
      $region13: #{tpu_custom_call.1} parent=5 // pred_check
        %p112 = pneg %p111
      $region14: #{tpu_custom_call.1} parent=5 // pred_check_branch
        %114 = sbr.rel (%p112) target = $region16
      $region15: #{tpu_custom_call.1} parent=5 // pred_region
        // Predicated region
        $region17: #{tpu_custom_call.1} parent=15 // pred_check
          %p115 = pneg %p38
        $region18: #{tpu_custom_call.1} parent=15 // pred_check_branch
          %117 = sbr.rel (%p115) target = $region20
        $region19: #{tpu_custom_call.1} parent=15 // pred_region
          %s118 = sand.u32 %s28, 1
          %s119 = scalar_lea.sflag [#allocation3], %s118
          %s120 = sand.u32 %s28, 1
          %s121 = smul.addr %s120, 128
          %s122 = scalar_lea.vmem [#allocation2], %s121
          %s123 = smul.u32 16, %s18
          %s125 = ssub.s32 2048, 2048
          %126 = vsyncadd %s119, %s125
          %s127 = smul.addr %s123, 128
          %s128 = scalar_lea.hbm %s0, %s127
          %s129 = sshll.u32 %s122, 4
          %s130 = int_to_ptr.vmem [resolvable:$true] %s129
          %135 = dma.hbm_to_vmem [thread:$0]  %s128, 2048, %s130, %s119, 128, 128, 8
        $region20: #{tpu_custom_call.1} parent=15 // pred_fallthru
          _
      $region16: #{tpu_custom_call.1} parent=5 // pred_fallthru
        _
      %p136 = scmp.le.s32.totalorder 1, %s18
      %p137 = scmp.lt.s32.totalorder %s18, 3
      %p138 = pnand %p136, %p137
      %p139 = pneg %p138
      // Predicated region
      $region21: #{tpu_custom_call.1} parent=5 // pred_check
        _
      $region22: #{tpu_custom_call.1} parent=5 // pred_check_branch
        %141 = sbr.rel (%p138) target = $region24
      $region23: #{tpu_custom_call.1} parent=5 // pred_region
        %s142 = ssub.s32 %s18, 1
        %s143 = sand.u32 %s31, 1
        %s144 = scalar_lea.sflag [#allocation3], %s143
        %s145 = sand.u32 %s31, 1
        %s146 = smul.addr %s145, 128
        %s147 = scalar_lea.vmem [#allocation2], %s146
        // Predicated region
        $region25: #{tpu_custom_call.1} parent=23 // pred_check
          %p148 = pneg %p44
        $region26: #{tpu_custom_call.1} parent=23 // pred_check_branch
          %150 = sbr.rel (%p148) target = $region28
        $region27: #{tpu_custom_call.1} parent=23 // pred_region
          %151 = dma.done %s144, 2048
        $region28: #{tpu_custom_call.1} parent=23 // pred_fallthru
          _
        %s152 = sand.u32 %s31, 1
        %s153 = scalar_lea.sflag [#allocation3], %s152
        %s154 = sand.u32 %s31, 1
        %s155 = smul.addr %s154, 128
        %s156 = scalar_lea.vmem [#allocation2], %s155
        %p157 = pneg %p44
        %p158 = pneg %p41
        %p159 = pneg %p70
        %p160 = pneg %p67
        %s161 = sand.u32 %s57, 1
        %s162 = scalar_lea.sflag [#allocation4], %s161
        %s163 = sand.u32 %s57, 1
        %s164 = smul.addr %s163, 128
        %s165 = scalar_lea.vmem [#allocation5], %s164
        %p166 = pneg %p96
        %p167 = pneg %p93
        %s168 = sand.u32 %s83, 1
        %s169 = scalar_lea.sflag [#allocation7], %s168
        %s170 = sand.u32 %s83, 1
        %s171 = smul.addr %s170, 128
        %s172 = scalar_lea.vmem [#allocation6], %s171
        %s173 = smul.u32 16, %s23
        %s174 = smul.u32 16, %s23
        %s175 = smul.u32 16, %s23
        %v176 = vld [vmem:[%s147] sm:$0xff]
        %v177 = vld [vmem:[%s147 + $0x8] sm:$0xff]
        %v178 = vld [vmem:[%s147 + $0x10] sm:$0xff]
        %v179 = vld [vmem:[%s147 + $0x18] sm:$0xff]
        %v180 = vld [vmem:[%s147 + $0x20] sm:$0xff]
        %v181 = vld [vmem:[%s147 + $0x28] sm:$0xff]
        %v182 = vld [vmem:[%s147 + $0x30] sm:$0xff]
        %v183 = vld [vmem:[%s147 + $0x38] sm:$0xff]
        %v184 = vld [vmem:[%s147 + $0x40] sm:$0xff]
        %v185 = vld [vmem:[%s147 + $0x48] sm:$0xff]
        %v186 = vld [vmem:[%s147 + $0x50] sm:$0xff]
        %v187 = vld [vmem:[%s147 + $0x58] sm:$0xff]
        %v188 = vld [vmem:[%s147 + $0x60] sm:$0xff]
        %v189 = vld [vmem:[%s147 + $0x68] sm:$0xff]
        %v190 = vld [vmem:[%s147 + $0x70] sm:$0xff]
        %v191 = vld [vmem:[%s147 + $0x78] sm:$0xff]
        %v192 = vlaneseq
        %v193 = vand.u32 %v192, 127
        %v194 = vand.u32 %v193, 15
        %v195 = vand.u32 %v194, 1
        %vm196 = vcmp.ne.s32.totalorder %v195, 0
        %197 = vrot.lane.b32.xlu0 %v176, 1
        %v198 = vpop.permute.xlu0 %197
        %199 = vrot.lane.b32.xlu0 %v177, 1
        %v200 = vpop.permute.xlu0 %199
        %201 = vrot.lane.b32.xlu0 %v178, 1
        %v202 = vpop.permute.xlu0 %201
        %203 = vrot.lane.b32.xlu0 %v179, 1
        %v204 = vpop.permute.xlu0 %203
        %205 = vrot.lane.b32.xlu0 %v180, 1
        %v206 = vpop.permute.xlu0 %205
        %207 = vrot.lane.b32.xlu0 %v181, 1
        %v208 = vpop.permute.xlu0 %207
        %209 = vrot.lane.b32.xlu0 %v182, 1
        %v210 = vpop.permute.xlu0 %209
        %211 = vrot.lane.b32.xlu0 %v183, 1
        %v212 = vpop.permute.xlu0 %211
        %213 = vrot.lane.b32.xlu0 %v184, 1
        %v214 = vpop.permute.xlu0 %213
        %215 = vrot.lane.b32.xlu0 %v185, 1
        %v216 = vpop.permute.xlu0 %215
        %217 = vrot.lane.b32.xlu0 %v186, 1
        %v218 = vpop.permute.xlu0 %217
        %219 = vrot.lane.b32.xlu0 %v187, 1
        %v220 = vpop.permute.xlu0 %219
        %221 = vrot.lane.b32.xlu0 %v188, 1
        %v222 = vpop.permute.xlu0 %221
        %223 = vrot.lane.b32.xlu0 %v189, 1
        %v224 = vpop.permute.xlu0 %223
        %225 = vrot.lane.b32.xlu0 %v190, 1
        %v226 = vpop.permute.xlu0 %225
        %227 = vrot.lane.b32.xlu0 %v191, 1
        %v228 = vpop.permute.xlu0 %227
        %v229 = vsel %vm196, %v198, %v176
        %v230 = vsel %vm196, %v200, %v177
        %v231 = vsel %vm196, %v202, %v178
        %v232 = vsel %vm196, %v204, %v179
        %v233 = vsel %vm196, %v206, %v180
        %v234 = vsel %vm196, %v208, %v181
        %v235 = vsel %vm196, %v210, %v182
        %v236 = vsel %vm196, %v212, %v183
        %v237 = vsel %vm196, %v214, %v184
        %v238 = vsel %vm196, %v216, %v185
        %v239 = vsel %vm196, %v218, %v186
        %v240 = vsel %vm196, %v220, %v187
        %v241 = vsel %vm196, %v222, %v188
        %v242 = vsel %vm196, %v224, %v189
        %v243 = vsel %vm196, %v226, %v190
        %v244 = vsel %vm196, %v228, %v191
        %vm245 = vcmp.eq.s32.totalorder %v195, 0
        %246 = vrot.lane.b32.xlu0 %v176, 127
        %v247 = vpop.permute.xlu0 %246
        %248 = vrot.lane.b32.xlu0 %v177, 127
        %v249 = vpop.permute.xlu0 %248
        %250 = vrot.lane.b32.xlu0 %v178, 127
        %v251 = vpop.permute.xlu0 %250
        %252 = vrot.lane.b32.xlu0 %v179, 127
        %v253 = vpop.permute.xlu0 %252
        %254 = vrot.lane.b32.xlu0 %v180, 127
        %v255 = vpop.permute.xlu0 %254
        %256 = vrot.lane.b32.xlu0 %v181, 127
        %v257 = vpop.permute.xlu0 %256
        %258 = vrot.lane.b32.xlu0 %v182, 127
        %v259 = vpop.permute.xlu0 %258
        %260 = vrot.lane.b32.xlu0 %v183, 127
        %v261 = vpop.permute.xlu0 %260
        %262 = vrot.lane.b32.xlu0 %v184, 127
        %v263 = vpop.permute.xlu0 %262
        %264 = vrot.lane.b32.xlu0 %v185, 127
        %v265 = vpop.permute.xlu0 %264
        %266 = vrot.lane.b32.xlu0 %v186, 127
        %v267 = vpop.permute.xlu0 %266
        %268 = vrot.lane.b32.xlu0 %v187, 127
        %v269 = vpop.permute.xlu0 %268
        %270 = vrot.lane.b32.xlu0 %v188, 127
        %v271 = vpop.permute.xlu0 %270
        %272 = vrot.lane.b32.xlu0 %v189, 127
        %v273 = vpop.permute.xlu0 %272
        %274 = vrot.lane.b32.xlu0 %v190, 127
        %v275 = vpop.permute.xlu0 %274
        %276 = vrot.lane.b32.xlu0 %v191, 127
        %v277 = vpop.permute.xlu0 %276
        %v278 = vsel %vm245, %v247, %v176
        %v279 = vsel %vm245, %v249, %v177
        %v280 = vsel %vm245, %v251, %v178
        %v281 = vsel %vm245, %v253, %v179
        %v282 = vsel %vm245, %v255, %v180
        %v283 = vsel %vm245, %v257, %v181
        %v284 = vsel %vm245, %v259, %v182
        %v285 = vsel %vm245, %v261, %v183
        %v286 = vsel %vm245, %v263, %v184
        %v287 = vsel %vm245, %v265, %v185
        %v288 = vsel %vm245, %v267, %v186
        %v289 = vsel %vm245, %v269, %v187
        %v290 = vsel %vm245, %v271, %v188
        %v291 = vsel %vm245, %v273, %v189
        %v292 = vsel %vm245, %v275, %v190
        %v293 = vsel %vm245, %v277, %v191
        %v294 = vand.u32 %v194, 2
        %vm295 = vcmp.ne.s32.totalorder %v294, 0
        %296 = vrot.lane.b32.xlu0 %v229, 2
        %v297 = vpop.permute.xlu0 %296
        %298 = vrot.lane.b32.xlu0 %v230, 2
        %v299 = vpop.permute.xlu0 %298
        %300 = vrot.lane.b32.xlu0 %v231, 2
        %v301 = vpop.permute.xlu0 %300
        %302 = vrot.lane.b32.xlu0 %v232, 2
        %v303 = vpop.permute.xlu0 %302
        %304 = vrot.lane.b32.xlu0 %v233, 2
        %v305 = vpop.permute.xlu0 %304
        %306 = vrot.lane.b32.xlu0 %v234, 2
        %v307 = vpop.permute.xlu0 %306
        %308 = vrot.lane.b32.xlu0 %v235, 2
        %v309 = vpop.permute.xlu0 %308
        %310 = vrot.lane.b32.xlu0 %v236, 2
        %v311 = vpop.permute.xlu0 %310
        %312 = vrot.lane.b32.xlu0 %v237, 2
        %v313 = vpop.permute.xlu0 %312
        %314 = vrot.lane.b32.xlu0 %v238, 2
        %v315 = vpop.permute.xlu0 %314
        %316 = vrot.lane.b32.xlu0 %v239, 2
        %v317 = vpop.permute.xlu0 %316
        %318 = vrot.lane.b32.xlu0 %v240, 2
        %v319 = vpop.permute.xlu0 %318
        %320 = vrot.lane.b32.xlu0 %v241, 2
        %v321 = vpop.permute.xlu0 %320
        %322 = vrot.lane.b32.xlu0 %v242, 2
        %v323 = vpop.permute.xlu0 %322
        %324 = vrot.lane.b32.xlu0 %v243, 2
        %v325 = vpop.permute.xlu0 %324
        %326 = vrot.lane.b32.xlu0 %v244, 2
        %v327 = vpop.permute.xlu0 %326
        %v328 = vsel %vm295, %v297, %v229
        %v329 = vsel %vm295, %v299, %v230
        %v330 = vsel %vm295, %v301, %v231
        %v331 = vsel %vm295, %v303, %v232
        %v332 = vsel %vm295, %v305, %v233
        %v333 = vsel %vm295, %v307, %v234
        %v334 = vsel %vm295, %v309, %v235
        %v335 = vsel %vm295, %v311, %v236
        %v336 = vsel %vm295, %v313, %v237
        %v337 = vsel %vm295, %v315, %v238
        %v338 = vsel %vm295, %v317, %v239
        %v339 = vsel %vm295, %v319, %v240
        %v340 = vsel %vm295, %v321, %v241
        %v341 = vsel %vm295, %v323, %v242
        %v342 = vsel %vm295, %v325, %v243
        %v343 = vsel %vm295, %v327, %v244
        %vm344 = vcmp.eq.s32.totalorder %v294, 0
        %345 = vrot.lane.b32.xlu0 %v278, 126
        %v346 = vpop.permute.xlu0 %345
        %347 = vrot.lane.b32.xlu0 %v279, 126
        %v348 = vpop.permute.xlu0 %347
        %349 = vrot.lane.b32.xlu0 %v280, 126
        %v350 = vpop.permute.xlu0 %349
        %351 = vrot.lane.b32.xlu0 %v281, 126
        %v352 = vpop.permute.xlu0 %351
        %353 = vrot.lane.b32.xlu0 %v282, 126
        %v354 = vpop.permute.xlu0 %353
        %355 = vrot.lane.b32.xlu0 %v283, 126
        %v356 = vpop.permute.xlu0 %355
        %357 = vrot.lane.b32.xlu0 %v284, 126
        %v358 = vpop.permute.xlu0 %357
        %359 = vrot.lane.b32.xlu0 %v285, 126
        %v360 = vpop.permute.xlu0 %359
        %361 = vrot.lane.b32.xlu0 %v286, 126
        %v362 = vpop.permute.xlu0 %361
        %363 = vrot.lane.b32.xlu0 %v287, 126
        %v364 = vpop.permute.xlu0 %363
        %365 = vrot.lane.b32.xlu0 %v288, 126
        %v366 = vpop.permute.xlu0 %365
        %367 = vrot.lane.b32.xlu0 %v289, 126
        %v368 = vpop.permute.xlu0 %367
        %369 = vrot.lane.b32.xlu0 %v290, 126
        %v370 = vpop.permute.xlu0 %369
        %371 = vrot.lane.b32.xlu0 %v291, 126
        %v372 = vpop.permute.xlu0 %371
        %373 = vrot.lane.b32.xlu0 %v292, 126
        %v374 = vpop.permute.xlu0 %373
        %375 = vrot.lane.b32.xlu0 %v293, 126
        %v376 = vpop.permute.xlu0 %375
        %v377 = vsel %vm344, %v346, %v278
        %v378 = vsel %vm344, %v348, %v279
        %v379 = vsel %vm344, %v350, %v280
        %v380 = vsel %vm344, %v352, %v281
        %v381 = vsel %vm344, %v354, %v282
        %v382 = vsel %vm344, %v356, %v283
        %v383 = vsel %vm344, %v358, %v284
        %v384 = vsel %vm344, %v360, %v285
        %v385 = vsel %vm344, %v362, %v286
        %v386 = vsel %vm344, %v364, %v287
        %v387 = vsel %vm344, %v366, %v288
        %v388 = vsel %vm344, %v368, %v289
        %v389 = vsel %vm344, %v370, %v290
        %v390 = vsel %vm344, %v372, %v291
        %v391 = vsel %vm344, %v374, %v292
        %v392 = vsel %vm344, %v376, %v293
        %v393 = vand.u32 %v194, 4
        %vm394 = vcmp.ne.s32.totalorder %v393, 0
        %395 = vrot.lane.b32.xlu0 %v328, 4
        %v396 = vpop.permute.xlu0 %395
        %397 = vrot.lane.b32.xlu0 %v329, 4
        %v398 = vpop.permute.xlu0 %397
        %399 = vrot.lane.b32.xlu0 %v330, 4
        %v400 = vpop.permute.xlu0 %399
        %401 = vrot.lane.b32.xlu0 %v331, 4
        %v402 = vpop.permute.xlu0 %401
        %403 = vrot.lane.b32.xlu0 %v332, 4
        %v404 = vpop.permute.xlu0 %403
        %405 = vrot.lane.b32.xlu0 %v333, 4
        %v406 = vpop.permute.xlu0 %405
        %407 = vrot.lane.b32.xlu0 %v334, 4
        %v408 = vpop.permute.xlu0 %407
        %409 = vrot.lane.b32.xlu0 %v335, 4
        %v410 = vpop.permute.xlu0 %409
        %411 = vrot.lane.b32.xlu0 %v336, 4
        %v412 = vpop.permute.xlu0 %411
        %413 = vrot.lane.b32.xlu0 %v337, 4
        %v414 = vpop.permute.xlu0 %413
        %415 = vrot.lane.b32.xlu0 %v338, 4
        %v416 = vpop.permute.xlu0 %415
        %417 = vrot.lane.b32.xlu0 %v339, 4
        %v418 = vpop.permute.xlu0 %417
        %419 = vrot.lane.b32.xlu0 %v340, 4
        %v420 = vpop.permute.xlu0 %419
        %421 = vrot.lane.b32.xlu0 %v341, 4
        %v422 = vpop.permute.xlu0 %421
        %423 = vrot.lane.b32.xlu0 %v342, 4
        %v424 = vpop.permute.xlu0 %423
        %425 = vrot.lane.b32.xlu0 %v343, 4
        %v426 = vpop.permute.xlu0 %425
        %v427 = vsel %vm394, %v396, %v328
        %v428 = vsel %vm394, %v398, %v329
        %v429 = vsel %vm394, %v400, %v330
        %v430 = vsel %vm394, %v402, %v331
        %v431 = vsel %vm394, %v404, %v332
        %v432 = vsel %vm394, %v406, %v333
        %v433 = vsel %vm394, %v408, %v334
        %v434 = vsel %vm394, %v410, %v335
        %v435 = vsel %vm394, %v412, %v336
        %v436 = vsel %vm394, %v414, %v337
        %v437 = vsel %vm394, %v416, %v338
        %v438 = vsel %vm394, %v418, %v339
        %v439 = vsel %vm394, %v420, %v340
        %v440 = vsel %vm394, %v422, %v341
        %v441 = vsel %vm394, %v424, %v342
        %v442 = vsel %vm394, %v426, %v343
        %vm443 = vcmp.eq.s32.totalorder %v393, 0
        %444 = vrot.lane.b32.xlu0 %v377, 124
        %v445 = vpop.permute.xlu0 %444
        %446 = vrot.lane.b32.xlu0 %v378, 124
        %v447 = vpop.permute.xlu0 %446
        %448 = vrot.lane.b32.xlu0 %v379, 124
        %v449 = vpop.permute.xlu0 %448
        %450 = vrot.lane.b32.xlu0 %v380, 124
        %v451 = vpop.permute.xlu0 %450
        %452 = vrot.lane.b32.xlu0 %v381, 124
        %v453 = vpop.permute.xlu0 %452
        %454 = vrot.lane.b32.xlu0 %v382, 124
        %v455 = vpop.permute.xlu0 %454
        %456 = vrot.lane.b32.xlu0 %v383, 124
        %v457 = vpop.permute.xlu0 %456
        %458 = vrot.lane.b32.xlu0 %v384, 124
        %v459 = vpop.permute.xlu0 %458
        %460 = vrot.lane.b32.xlu0 %v385, 124
        %v461 = vpop.permute.xlu0 %460
        %462 = vrot.lane.b32.xlu0 %v386, 124
        %v463 = vpop.permute.xlu0 %462
        %464 = vrot.lane.b32.xlu0 %v387, 124
        %v465 = vpop.permute.xlu0 %464
        %466 = vrot.lane.b32.xlu0 %v388, 124
        %v467 = vpop.permute.xlu0 %466
        %468 = vrot.lane.b32.xlu0 %v389, 124
        %v469 = vpop.permute.xlu0 %468
        %470 = vrot.lane.b32.xlu0 %v390, 124
        %v471 = vpop.permute.xlu0 %470
        %472 = vrot.lane.b32.xlu0 %v391, 124
        %v473 = vpop.permute.xlu0 %472
        %474 = vrot.lane.b32.xlu0 %v392, 124
        %v475 = vpop.permute.xlu0 %474
        %v476 = vsel %vm443, %v445, %v377
        %v477 = vsel %vm443, %v447, %v378
        %v478 = vsel %vm443, %v449, %v379
        %v479 = vsel %vm443, %v451, %v380
        %v480 = vsel %vm443, %v453, %v381
        %v481 = vsel %vm443, %v455, %v382
        %v482 = vsel %vm443, %v457, %v383
        %v483 = vsel %vm443, %v459, %v384
        %v484 = vsel %vm443, %v461, %v385
        %v485 = vsel %vm443, %v463, %v386
        %v486 = vsel %vm443, %v465, %v387
        %v487 = vsel %vm443, %v467, %v388
        %v488 = vsel %vm443, %v469, %v389
        %v489 = vsel %vm443, %v471, %v390
        %v490 = vsel %vm443, %v473, %v391
        %v491 = vsel %vm443, %v475, %v392
        %v492 = vand.u32 %v194, 8
        %vm493 = vcmp.ne.s32.totalorder %v492, 0
        %494 = vrot.lane.b32.xlu0 %v427, 8
        %v495 = vpop.permute.xlu0 %494
        %496 = vrot.lane.b32.xlu0 %v428, 8
        %v497 = vpop.permute.xlu0 %496
        %498 = vrot.lane.b32.xlu0 %v429, 8
        %v499 = vpop.permute.xlu0 %498
        %500 = vrot.lane.b32.xlu0 %v430, 8
        %v501 = vpop.permute.xlu0 %500
        %502 = vrot.lane.b32.xlu0 %v431, 8
        %v503 = vpop.permute.xlu0 %502
        %504 = vrot.lane.b32.xlu0 %v432, 8
        %v505 = vpop.permute.xlu0 %504
        %506 = vrot.lane.b32.xlu0 %v433, 8
        %v507 = vpop.permute.xlu0 %506
        %508 = vrot.lane.b32.xlu0 %v434, 8
        %v509 = vpop.permute.xlu0 %508
        %510 = vrot.lane.b32.xlu0 %v435, 8
        %v511 = vpop.permute.xlu0 %510
        %512 = vrot.lane.b32.xlu0 %v436, 8
        %v513 = vpop.permute.xlu0 %512
        %514 = vrot.lane.b32.xlu0 %v437, 8
        %v515 = vpop.permute.xlu0 %514
        %516 = vrot.lane.b32.xlu0 %v438, 8
        %v517 = vpop.permute.xlu0 %516
        %518 = vrot.lane.b32.xlu0 %v439, 8
        %v519 = vpop.permute.xlu0 %518
        %520 = vrot.lane.b32.xlu0 %v440, 8
        %v521 = vpop.permute.xlu0 %520
        %522 = vrot.lane.b32.xlu0 %v441, 8
        %v523 = vpop.permute.xlu0 %522
        %524 = vrot.lane.b32.xlu0 %v442, 8
        %v525 = vpop.permute.xlu0 %524
        %v526 = vsel %vm493, %v495, %v427
        %v527 = vsel %vm493, %v497, %v428
        %v528 = vsel %vm493, %v499, %v429
        %v529 = vsel %vm493, %v501, %v430
        %v530 = vsel %vm493, %v503, %v431
        %v531 = vsel %vm493, %v505, %v432
        %v532 = vsel %vm493, %v507, %v433
        %v533 = vsel %vm493, %v509, %v434
        %v534 = vsel %vm493, %v511, %v435
        %v535 = vsel %vm493, %v513, %v436
        %v536 = vsel %vm493, %v515, %v437
        %v537 = vsel %vm493, %v517, %v438
        %v538 = vsel %vm493, %v519, %v439
        %v539 = vsel %vm493, %v521, %v440
        %v540 = vsel %vm493, %v523, %v441
        %v541 = vsel %vm493, %v525, %v442
        %vm542 = vcmp.eq.s32.totalorder %v492, 0
        %543 = vrot.lane.b32.xlu0 %v476, 120
        %v544 = vpop.permute.xlu0 %543
        %545 = vrot.lane.b32.xlu0 %v477, 120
        %v546 = vpop.permute.xlu0 %545
        %547 = vrot.lane.b32.xlu0 %v478, 120
        %v548 = vpop.permute.xlu0 %547
        %549 = vrot.lane.b32.xlu0 %v479, 120
        %v550 = vpop.permute.xlu0 %549
        %551 = vrot.lane.b32.xlu0 %v480, 120
        %v552 = vpop.permute.xlu0 %551
        %553 = vrot.lane.b32.xlu0 %v481, 120
        %v554 = vpop.permute.xlu0 %553
        %555 = vrot.lane.b32.xlu0 %v482, 120
        %v556 = vpop.permute.xlu0 %555
        %557 = vrot.lane.b32.xlu0 %v483, 120
        %v558 = vpop.permute.xlu0 %557
        %559 = vrot.lane.b32.xlu0 %v484, 120
        %v560 = vpop.permute.xlu0 %559
        %561 = vrot.lane.b32.xlu0 %v485, 120
        %v562 = vpop.permute.xlu0 %561
        %563 = vrot.lane.b32.xlu0 %v486, 120
        %v564 = vpop.permute.xlu0 %563
        %565 = vrot.lane.b32.xlu0 %v487, 120
        %v566 = vpop.permute.xlu0 %565
        %567 = vrot.lane.b32.xlu0 %v488, 120
        %v568 = vpop.permute.xlu0 %567
        %569 = vrot.lane.b32.xlu0 %v489, 120
        %v570 = vpop.permute.xlu0 %569
        %571 = vrot.lane.b32.xlu0 %v490, 120
        %v572 = vpop.permute.xlu0 %571
        %573 = vrot.lane.b32.xlu0 %v491, 120
        %v574 = vpop.permute.xlu0 %573
        %v575 = vsel %vm542, %v544, %v476
        %v576 = vsel %vm542, %v546, %v477
        %v577 = vsel %vm542, %v548, %v478
        %v578 = vsel %vm542, %v550, %v479
        %v579 = vsel %vm542, %v552, %v480
        %v580 = vsel %vm542, %v554, %v481
        %v581 = vsel %vm542, %v556, %v482
        %v582 = vsel %vm542, %v558, %v483
        %v583 = vsel %vm542, %v560, %v484
        %v584 = vsel %vm542, %v562, %v485
        %v585 = vsel %vm542, %v564, %v486
        %v586 = vsel %vm542, %v566, %v487
        %v587 = vsel %vm542, %v568, %v488
        %v588 = vsel %vm542, %v570, %v489
        %v589 = vsel %vm542, %v572, %v490
        %v590 = vsel %vm542, %v574, %v491
        %vm591 = vcmp.lt.s32.totalorder %v194, 15
        %v592 = vsel %vm591, %v247, %v575
        %v593 = vsel %vm591, %v249, %v576
        %v594 = vsel %vm591, %v251, %v577
        %v595 = vsel %vm591, %v253, %v578
        %v596 = vsel %vm591, %v255, %v579
        %v597 = vsel %vm591, %v257, %v580
        %v598 = vsel %vm591, %v259, %v581
        %v599 = vsel %vm591, %v261, %v582
        %v600 = vsel %vm591, %v263, %v583
        %v601 = vsel %vm591, %v265, %v584
        %v602 = vsel %vm591, %v267, %v585
        %v603 = vsel %vm591, %v269, %v586
        %v604 = vsel %vm591, %v271, %v587
        %v605 = vsel %vm591, %v273, %v588
        %v606 = vsel %vm591, %v275, %v589
        %v607 = vsel %vm591, %v277, %v590
        %v608 = vadd.f32 %v176, %v592
        %v609 = vadd.f32 %v177, %v593
        %v610 = vadd.f32 %v178, %v594
        %v611 = vadd.f32 %v179, %v595
        %v612 = vadd.f32 %v180, %v596
        %v613 = vadd.f32 %v181, %v597
        %v614 = vadd.f32 %v182, %v598
        %v615 = vadd.f32 %v183, %v599
        %v616 = vadd.f32 %v184, %v600
        %v617 = vadd.f32 %v185, %v601
        %v618 = vadd.f32 %v186, %v602
        %v619 = vadd.f32 %v187, %v603
        %v620 = vadd.f32 %v188, %v604
        %v621 = vadd.f32 %v189, %v605
        %v622 = vadd.f32 %v190, %v606
        %v623 = vadd.f32 %v191, %v607
        %624 = vrot.lane.b32.xlu0 %v176, 126
        %v625 = vpop.permute.xlu0 %624
        %626 = vrot.lane.b32.xlu0 %v177, 126
        %v627 = vpop.permute.xlu0 %626
        %628 = vrot.lane.b32.xlu0 %v178, 126
        %v629 = vpop.permute.xlu0 %628
        %630 = vrot.lane.b32.xlu0 %v179, 126
        %v631 = vpop.permute.xlu0 %630
        %632 = vrot.lane.b32.xlu0 %v180, 126
        %v633 = vpop.permute.xlu0 %632
        %634 = vrot.lane.b32.xlu0 %v181, 126
        %v635 = vpop.permute.xlu0 %634
        %636 = vrot.lane.b32.xlu0 %v182, 126
        %v637 = vpop.permute.xlu0 %636
        %638 = vrot.lane.b32.xlu0 %v183, 126
        %v639 = vpop.permute.xlu0 %638
        %640 = vrot.lane.b32.xlu0 %v184, 126
        %v641 = vpop.permute.xlu0 %640
        %642 = vrot.lane.b32.xlu0 %v185, 126
        %v643 = vpop.permute.xlu0 %642
        %644 = vrot.lane.b32.xlu0 %v186, 126
        %v645 = vpop.permute.xlu0 %644
        %646 = vrot.lane.b32.xlu0 %v187, 126
        %v647 = vpop.permute.xlu0 %646
        %648 = vrot.lane.b32.xlu0 %v188, 126
        %v649 = vpop.permute.xlu0 %648
        %650 = vrot.lane.b32.xlu0 %v189, 126
        %v651 = vpop.permute.xlu0 %650
        %652 = vrot.lane.b32.xlu0 %v190, 126
        %v653 = vpop.permute.xlu0 %652
        %654 = vrot.lane.b32.xlu0 %v191, 126
        %v655 = vpop.permute.xlu0 %654
        %vm656 = vcmp.lt.s32.totalorder %v194, 14
        %v657 = vsel %vm656, %v625, %v575
        %v658 = vsel %vm656, %v627, %v576
        %v659 = vsel %vm656, %v629, %v577
        %v660 = vsel %vm656, %v631, %v578
        %v661 = vsel %vm656, %v633, %v579
        %v662 = vsel %vm656, %v635, %v580
        %v663 = vsel %vm656, %v637, %v581
        %v664 = vsel %vm656, %v639, %v582
        %v665 = vsel %vm656, %v641, %v583
        %v666 = vsel %vm656, %v643, %v584
        %v667 = vsel %vm656, %v645, %v585
        %v668 = vsel %vm656, %v647, %v586
        %v669 = vsel %vm656, %v649, %v587
        %v670 = vsel %vm656, %v651, %v588
        %v671 = vsel %vm656, %v653, %v589
        %v672 = vsel %vm656, %v655, %v590
        %v673 = vadd.f32 %v608, %v657
        %v674 = vadd.f32 %v609, %v658
        %v675 = vadd.f32 %v610, %v659
        %v676 = vadd.f32 %v611, %v660
        %v677 = vadd.f32 %v612, %v661
        %v678 = vadd.f32 %v613, %v662
        %v679 = vadd.f32 %v614, %v663
        %v680 = vadd.f32 %v615, %v664
        %v681 = vadd.f32 %v616, %v665
        %v682 = vadd.f32 %v617, %v666
        %v683 = vadd.f32 %v618, %v667
        %v684 = vadd.f32 %v619, %v668
        %v685 = vadd.f32 %v620, %v669
        %v686 = vadd.f32 %v621, %v670
        %v687 = vadd.f32 %v622, %v671
        %v688 = vadd.f32 %v623, %v672
        %689 = vrot.lane.b32.xlu0 %v176, 125
        %v690 = vpop.permute.xlu0 %689
        %691 = vrot.lane.b32.xlu0 %v177, 125
        %v692 = vpop.permute.xlu0 %691
        %693 = vrot.lane.b32.xlu0 %v178, 125
        %v694 = vpop.permute.xlu0 %693
        %695 = vrot.lane.b32.xlu0 %v179, 125
        %v696 = vpop.permute.xlu0 %695
        %697 = vrot.lane.b32.xlu0 %v180, 125
        %v698 = vpop.permute.xlu0 %697
        %699 = vrot.lane.b32.xlu0 %v181, 125
        %v700 = vpop.permute.xlu0 %699
        %701 = vrot.lane.b32.xlu0 %v182, 125
        %v702 = vpop.permute.xlu0 %701
        %703 = vrot.lane.b32.xlu0 %v183, 125
        %v704 = vpop.permute.xlu0 %703
        %705 = vrot.lane.b32.xlu0 %v184, 125
        %v706 = vpop.permute.xlu0 %705
        %707 = vrot.lane.b32.xlu0 %v185, 125
        %v708 = vpop.permute.xlu0 %707
        %709 = vrot.lane.b32.xlu0 %v186, 125
        %v710 = vpop.permute.xlu0 %709
        %711 = vrot.lane.b32.xlu0 %v187, 125
        %v712 = vpop.permute.xlu0 %711
        %713 = vrot.lane.b32.xlu0 %v188, 125
        %v714 = vpop.permute.xlu0 %713
        %715 = vrot.lane.b32.xlu0 %v189, 125
        %v716 = vpop.permute.xlu0 %715
        %717 = vrot.lane.b32.xlu0 %v190, 125
        %v718 = vpop.permute.xlu0 %717
        %719 = vrot.lane.b32.xlu0 %v191, 125
        %v720 = vpop.permute.xlu0 %719
        %vm721 = vcmp.lt.s32.totalorder %v194, 13
        %v722 = vsel %vm721, %v690, %v575
        %v723 = vsel %vm721, %v692, %v576
        %v724 = vsel %vm721, %v694, %v577
        %v725 = vsel %vm721, %v696, %v578
        %v726 = vsel %vm721, %v698, %v579
        %v727 = vsel %vm721, %v700, %v580
        %v728 = vsel %vm721, %v702, %v581
        %v729 = vsel %vm721, %v704, %v582
        %v730 = vsel %vm721, %v706, %v583
        %v731 = vsel %vm721, %v708, %v584
        %v732 = vsel %vm721, %v710, %v585
        %v733 = vsel %vm721, %v712, %v586
        %v734 = vsel %vm721, %v714, %v587
        %v735 = vsel %vm721, %v716, %v588
        %v736 = vsel %vm721, %v718, %v589
        %v737 = vsel %vm721, %v720, %v590
        %v738 = vadd.f32 %v673, %v722
        %v739 = vadd.f32 %v674, %v723
        %v740 = vadd.f32 %v675, %v724
        %v741 = vadd.f32 %v676, %v725
        %v742 = vadd.f32 %v677, %v726
        %v743 = vadd.f32 %v678, %v727
        %v744 = vadd.f32 %v679, %v728
        %v745 = vadd.f32 %v680, %v729
        %v746 = vadd.f32 %v681, %v730
        %v747 = vadd.f32 %v682, %v731
        %v748 = vadd.f32 %v683, %v732
        %v749 = vadd.f32 %v684, %v733
        %v750 = vadd.f32 %v685, %v734
        %v751 = vadd.f32 %v686, %v735
        %v752 = vadd.f32 %v687, %v736
        %v753 = vadd.f32 %v688, %v737
        %vm754 = vcmp.ge.s32.totalorder %v194, 1
        %v755 = vsel %vm754, %v198, %v526
        %v756 = vsel %vm754, %v200, %v527
        %v757 = vsel %vm754, %v202, %v528
        %v758 = vsel %vm754, %v204, %v529
        %v759 = vsel %vm754, %v206, %v530
        %v760 = vsel %vm754, %v208, %v531
        %v761 = vsel %vm754, %v210, %v532
        %v762 = vsel %vm754, %v212, %v533
        %v763 = vsel %vm754, %v214, %v534
        %v764 = vsel %vm754, %v216, %v535
        %v765 = vsel %vm754, %v218, %v536
        %v766 = vsel %vm754, %v220, %v537
        %v767 = vsel %vm754, %v222, %v538
        %v768 = vsel %vm754, %v224, %v539
        %v769 = vsel %vm754, %v226, %v540
        %v770 = vsel %vm754, %v228, %v541
        %v771 = vadd.f32 %v738, %v755
        %v772 = vadd.f32 %v739, %v756
        %v773 = vadd.f32 %v740, %v757
        %v774 = vadd.f32 %v741, %v758
        %v775 = vadd.f32 %v742, %v759
        %v776 = vadd.f32 %v743, %v760
        %v777 = vadd.f32 %v744, %v761
        %v778 = vadd.f32 %v745, %v762
        %v779 = vadd.f32 %v746, %v763
        %v780 = vadd.f32 %v747, %v764
        %v781 = vadd.f32 %v748, %v765
        %v782 = vadd.f32 %v749, %v766
        %v783 = vadd.f32 %v750, %v767
        %v784 = vadd.f32 %v751, %v768
        %v785 = vadd.f32 %v752, %v769
        %v786 = vadd.f32 %v753, %v770
        %787 = vrot.lane.b32.xlu0 %v176, 2
        %v788 = vpop.permute.xlu0 %787
        %789 = vrot.lane.b32.xlu0 %v177, 2
        %v790 = vpop.permute.xlu0 %789
        %791 = vrot.lane.b32.xlu0 %v178, 2
        %v792 = vpop.permute.xlu0 %791
        %793 = vrot.lane.b32.xlu0 %v179, 2
        %v794 = vpop.permute.xlu0 %793
        %795 = vrot.lane.b32.xlu0 %v180, 2
        %v796 = vpop.permute.xlu0 %795
        %797 = vrot.lane.b32.xlu0 %v181, 2
        %v798 = vpop.permute.xlu0 %797
        %799 = vrot.lane.b32.xlu0 %v182, 2
        %v800 = vpop.permute.xlu0 %799
        %801 = vrot.lane.b32.xlu0 %v183, 2
        %v802 = vpop.permute.xlu0 %801
        %803 = vrot.lane.b32.xlu0 %v184, 2
        %v804 = vpop.permute.xlu0 %803
        %805 = vrot.lane.b32.xlu0 %v185, 2
        %v806 = vpop.permute.xlu0 %805
        %807 = vrot.lane.b32.xlu0 %v186, 2
        %v808 = vpop.permute.xlu0 %807
        %809 = vrot.lane.b32.xlu0 %v187, 2
        %v810 = vpop.permute.xlu0 %809
        %811 = vrot.lane.b32.xlu0 %v188, 2
        %v812 = vpop.permute.xlu0 %811
        %813 = vrot.lane.b32.xlu0 %v189, 2
        %v814 = vpop.permute.xlu0 %813
        %815 = vrot.lane.b32.xlu0 %v190, 2
        %v816 = vpop.permute.xlu0 %815
        %817 = vrot.lane.b32.xlu0 %v191, 2
        %v818 = vpop.permute.xlu0 %817
        %vm819 = vcmp.ge.s32.totalorder %v194, 2
        %v820 = vsel %vm819, %v788, %v526
        %v821 = vsel %vm819, %v790, %v527
        %v822 = vsel %vm819, %v792, %v528
        %v823 = vsel %vm819, %v794, %v529
        %v824 = vsel %vm819, %v796, %v530
        %v825 = vsel %vm819, %v798, %v531
        %v826 = vsel %vm819, %v800, %v532
        %v827 = vsel %vm819, %v802, %v533
        %v828 = vsel %vm819, %v804, %v534
        %v829 = vsel %vm819, %v806, %v535
        %v830 = vsel %vm819, %v808, %v536
        %v831 = vsel %vm819, %v810, %v537
        %v832 = vsel %vm819, %v812, %v538
        %v833 = vsel %vm819, %v814, %v539
        %v834 = vsel %vm819, %v816, %v540
        %v835 = vsel %vm819, %v818, %v541
        %v836 = vadd.f32 %v771, %v820
        %v837 = vadd.f32 %v772, %v821
        %v838 = vadd.f32 %v773, %v822
        %v839 = vadd.f32 %v774, %v823
        %v840 = vadd.f32 %v775, %v824
        %v841 = vadd.f32 %v776, %v825
        %v842 = vadd.f32 %v777, %v826
        %v843 = vadd.f32 %v778, %v827
        %v844 = vadd.f32 %v779, %v828
        %v845 = vadd.f32 %v780, %v829
        %v846 = vadd.f32 %v781, %v830
        %v847 = vadd.f32 %v782, %v831
        %v848 = vadd.f32 %v783, %v832
        %v849 = vadd.f32 %v784, %v833
        %v850 = vadd.f32 %v785, %v834
        %v851 = vadd.f32 %v786, %v835
        %852 = vrot.lane.b32.xlu0 %v176, 3
        %v853 = vpop.permute.xlu0 %852
        %854 = vrot.lane.b32.xlu0 %v177, 3
        %v855 = vpop.permute.xlu0 %854
        %856 = vrot.lane.b32.xlu0 %v178, 3
        %v857 = vpop.permute.xlu0 %856
        %858 = vrot.lane.b32.xlu0 %v179, 3
        %v859 = vpop.permute.xlu0 %858
        %860 = vrot.lane.b32.xlu0 %v180, 3
        %v861 = vpop.permute.xlu0 %860
        %862 = vrot.lane.b32.xlu0 %v181, 3
        %v863 = vpop.permute.xlu0 %862
        %864 = vrot.lane.b32.xlu0 %v182, 3
        %v865 = vpop.permute.xlu0 %864
        %866 = vrot.lane.b32.xlu0 %v183, 3
        %v867 = vpop.permute.xlu0 %866
        %868 = vrot.lane.b32.xlu0 %v184, 3
        %v869 = vpop.permute.xlu0 %868
        %870 = vrot.lane.b32.xlu0 %v185, 3
        %v871 = vpop.permute.xlu0 %870
        %872 = vrot.lane.b32.xlu0 %v186, 3
        %v873 = vpop.permute.xlu0 %872
        %874 = vrot.lane.b32.xlu0 %v187, 3
        %v875 = vpop.permute.xlu0 %874
        %876 = vrot.lane.b32.xlu0 %v188, 3
        %v877 = vpop.permute.xlu0 %876
        %878 = vrot.lane.b32.xlu0 %v189, 3
        %v879 = vpop.permute.xlu0 %878
        %880 = vrot.lane.b32.xlu0 %v190, 3
        %v881 = vpop.permute.xlu0 %880
        %882 = vrot.lane.b32.xlu0 %v191, 3
        %v883 = vpop.permute.xlu0 %882
        %vm884 = vcmp.ge.s32.totalorder %v194, 3
        %v885 = vsel %vm884, %v853, %v526
        %v886 = vsel %vm884, %v855, %v527
        %v887 = vsel %vm884, %v857, %v528
        %v888 = vsel %vm884, %v859, %v529
        %v889 = vsel %vm884, %v861, %v530
        %v890 = vsel %vm884, %v863, %v531
        %v891 = vsel %vm884, %v865, %v532
        %v892 = vsel %vm884, %v867, %v533
        %v893 = vsel %vm884, %v869, %v534
        %v894 = vsel %vm884, %v871, %v535
        %v895 = vsel %vm884, %v873, %v536
        %v896 = vsel %vm884, %v875, %v537
        %v897 = vsel %vm884, %v877, %v538
        %v898 = vsel %vm884, %v879, %v539
        %v899 = vsel %vm884, %v881, %v540
        %v900 = vsel %vm884, %v883, %v541
        %v901 = vadd.f32 %v836, %v885
        %v902 = vadd.f32 %v837, %v886
        %v903 = vadd.f32 %v838, %v887
        %v904 = vadd.f32 %v839, %v888
        %v905 = vadd.f32 %v840, %v889
        %v906 = vadd.f32 %v841, %v890
        %v907 = vadd.f32 %v842, %v891
        %v908 = vadd.f32 %v843, %v892
        %v909 = vadd.f32 %v844, %v893
        %v910 = vadd.f32 %v845, %v894
        %v911 = vadd.f32 %v846, %v895
        %v912 = vadd.f32 %v847, %v896
        %v913 = vadd.f32 %v848, %v897
        %v914 = vadd.f32 %v849, %v898
        %v915 = vadd.f32 %v850, %v899
        %v916 = vadd.f32 %v851, %v900
        %v917 = vmul.f32 %v901, 0.14285715
        %v918 = vmul.f32 %v902, 0.14285715
        %v919 = vmul.f32 %v903, 0.14285715
        %v920 = vmul.f32 %v904, 0.14285715
        %v921 = vmul.f32 %v905, 0.14285715
        %v922 = vmul.f32 %v906, 0.14285715
        %v923 = vmul.f32 %v907, 0.14285715
        %v924 = vmul.f32 %v908, 0.14285715
        %v925 = vmul.f32 %v909, 0.14285715
        %v926 = vmul.f32 %v910, 0.14285715
        %v927 = vmul.f32 %v911, 0.14285715
        %v928 = vmul.f32 %v912, 0.14285715
        %v929 = vmul.f32 %v913, 0.14285715
        %v930 = vmul.f32 %v914, 0.14285715
        %v931 = vmul.f32 %v915, 0.14285715
        %v932 = vmul.f32 %v916, 0.14285715
        %933 = vst [vmem:[%s172] sm:$0xff] %v917
        %934 = vst [vmem:[%s172 + $0x8] sm:$0xff] %v918
        %935 = vst [vmem:[%s172 + $0x10] sm:$0xff] %v919
        %936 = vst [vmem:[%s172 + $0x18] sm:$0xff] %v920
        %937 = vst [vmem:[%s172 + $0x20] sm:$0xff] %v921
        %938 = vst [vmem:[%s172 + $0x28] sm:$0xff] %v922
        %939 = vst [vmem:[%s172 + $0x30] sm:$0xff] %v923
        %940 = vst [vmem:[%s172 + $0x38] sm:$0xff] %v924
        %941 = vst [vmem:[%s172 + $0x40] sm:$0xff] %v925
        %942 = vst [vmem:[%s172 + $0x48] sm:$0xff] %v926
        %943 = vst [vmem:[%s172 + $0x50] sm:$0xff] %v927
        %944 = vst [vmem:[%s172 + $0x58] sm:$0xff] %v928
        %945 = vst [vmem:[%s172 + $0x60] sm:$0xff] %v929
        %946 = vst [vmem:[%s172 + $0x68] sm:$0xff] %v930
        %947 = vst [vmem:[%s172 + $0x70] sm:$0xff] %v931
        %948 = vst [vmem:[%s172 + $0x78] sm:$0xff] %v932
        %v949 = vsub.f32 %v176, %v917
        %v950 = vsub.f32 %v177, %v918
        %v951 = vsub.f32 %v178, %v919
        %v952 = vsub.f32 %v179, %v920
        %v953 = vsub.f32 %v180, %v921
        %v954 = vsub.f32 %v181, %v922
        %v955 = vsub.f32 %v182, %v923
        %v956 = vsub.f32 %v183, %v924
        %v957 = vsub.f32 %v184, %v925
        %v958 = vsub.f32 %v185, %v926
        %v959 = vsub.f32 %v186, %v927
        %v960 = vsub.f32 %v187, %v928
        %v961 = vsub.f32 %v188, %v929
        %v962 = vsub.f32 %v189, %v930
        %v963 = vsub.f32 %v190, %v931
        %v964 = vsub.f32 %v191, %v932
        %965 = vst [vmem:[%s165] sm:$0xff] %v949
        %966 = vst [vmem:[%s165 + $0x8] sm:$0xff] %v950
        %967 = vst [vmem:[%s165 + $0x10] sm:$0xff] %v951
        %968 = vst [vmem:[%s165 + $0x18] sm:$0xff] %v952
        %969 = vst [vmem:[%s165 + $0x20] sm:$0xff] %v953
        %970 = vst [vmem:[%s165 + $0x28] sm:$0xff] %v954
        %971 = vst [vmem:[%s165 + $0x30] sm:$0xff] %v955
        %972 = vst [vmem:[%s165 + $0x38] sm:$0xff] %v956
        %973 = vst [vmem:[%s165 + $0x40] sm:$0xff] %v957
        %974 = vst [vmem:[%s165 + $0x48] sm:$0xff] %v958
        %975 = vst [vmem:[%s165 + $0x50] sm:$0xff] %v959
        %976 = vst [vmem:[%s165 + $0x58] sm:$0xff] %v960
        %977 = vst [vmem:[%s165 + $0x60] sm:$0xff] %v961
        %978 = vst [vmem:[%s165 + $0x68] sm:$0xff] %v962
        %979 = vst [vmem:[%s165 + $0x70] sm:$0xff] %v963
        %980 = vst [vmem:[%s165 + $0x78] sm:$0xff] %v964
        %s981 = sand.u32 %s57, 1
        %s982 = scalar_lea.sflag [#allocation4], %s981
        %s983 = sand.u32 %s57, 1
        %s984 = smul.addr %s983, 128
        %s985 = scalar_lea.vmem [#allocation5], %s984
        %s986 = sand.u32 %s83, 1
        %s987 = scalar_lea.sflag [#allocation7], %s986
        %s988 = sand.u32 %s83, 1
        %s989 = smul.addr %s988, 128
        %s990 = scalar_lea.vmem [#allocation6], %s989
        // Predicated region
        $region29: #{tpu_custom_call.1} parent=23 // pred_check
          %p991 = pneg %p67
        $region30: #{tpu_custom_call.1} parent=23 // pred_check_branch
          %993 = sbr.rel (%p991) target = $region32
        $region31: #{tpu_custom_call.1} parent=23 // pred_region
          %s994 = smul.u32 16, %s23
          %s996 = ssub.s32 2048, 2048
          %997 = vsyncadd %s982, %s996
          %s998 = smul.addr %s994, 128
          %s999 = scalar_lea.hbm %s1, %s998
          %s1000 = sshll.u32 %s985, 4
          %s1001 = int_to_ptr.vmem [resolvable:$true] %s1000
          %1006 = dma.vmem_to_hbm [thread:$0]  %s1001, 2048, %s999, %s982, 128, 128, 8
        $region32: #{tpu_custom_call.1} parent=23 // pred_fallthru
          _
        // Predicated region
        $region33: #{tpu_custom_call.1} parent=23 // pred_check
          %p1007 = pneg %p93
        $region34: #{tpu_custom_call.1} parent=23 // pred_check_branch
          %1009 = sbr.rel (%p1007) target = $region36
        $region35: #{tpu_custom_call.1} parent=23 // pred_region
          %s1010 = smul.u32 16, %s23
          %s1012 = ssub.s32 2048, 2048
          %1013 = vsyncadd %s987, %s1012
          %s1014 = smul.addr %s1010, 128
          %s1015 = scalar_lea.hbm %s2, %s1014
          %s1016 = sshll.u32 %s990, 4
          %s1017 = int_to_ptr.vmem [resolvable:$true] %s1016
          %1022 = dma.vmem_to_hbm [thread:$0]  %s1017, 2048, %s1015, %s987, 128, 128, 8
        $region36: #{tpu_custom_call.1} parent=23 // pred_fallthru
          _
      $region24: #{tpu_custom_call.1} parent=5 // pred_fallthru
        _
      %p1023 = scmp.le.s32.totalorder 2, %s18
      // Predicated region
      $region37: #{tpu_custom_call.1} parent=5 // pred_check
        %p1024 = pneg %p1023
      $region38: #{tpu_custom_call.1} parent=5 // pred_check_branch
        %1026 = sbr.rel (%p1024) target = $region40
      $region39: #{tpu_custom_call.1} parent=5 // pred_region
        %s1027 = ssub.s32 %s18, 2
        // Predicated region
        $region41: #{tpu_custom_call.1} parent=39 // pred_check
          %p1028 = pneg %p73
        $region42: #{tpu_custom_call.1} parent=39 // pred_check_branch
          %1030 = sbr.rel (%p1028) target = $region44
        $region43: #{tpu_custom_call.1} parent=39 // pred_region
          %s1031 = sand.u32 %s58, 1
          %s1032 = scalar_lea.sflag [#allocation4], %s1031
          %s1033 = sand.u32 %s58, 1
          %s1034 = smul.addr %s1033, 128
          %s1035 = scalar_lea.vmem [#allocation5], %s1034
          %1036 = dma.done %s1032, 2048
        $region44: #{tpu_custom_call.1} parent=39 // pred_fallthru
          _
        // Predicated region
        $region45: #{tpu_custom_call.1} parent=39 // pred_check
          %p1037 = pneg %p99
        $region46: #{tpu_custom_call.1} parent=39 // pred_check_branch
          %1039 = sbr.rel (%p1037) target = $region48
        $region47: #{tpu_custom_call.1} parent=39 // pred_region
          %s1040 = sand.u32 %s84, 1
          %s1041 = scalar_lea.sflag [#allocation7], %s1040
          %s1042 = sand.u32 %s84, 1
          %s1043 = smul.addr %s1042, 128
          %s1044 = scalar_lea.vmem [#allocation6], %s1043
          %1045 = dma.done %s1041, 2048
        $region48: #{tpu_custom_call.1} parent=39 // pred_fallthru
          _
      $region40: #{tpu_custom_call.1} parent=5 // pred_fallthru
        _
    $region6: #{tpu_custom_call.1} parent=1 // loop_footer
      %s22 = sadd.s32 1, %s18
    $region7: #{tpu_custom_call.1} parent=1 // loop_footer_branch
      %17 = sbr.rel target = $region3
    $region8: #{tpu_custom_call.1} parent=1 // loop_exit
      _
    %1046 = vsyncpa [#allocation3], 1
    %s1047 = scalar_lea.sflag [#allocation3], 1
    %1048 = vsyncpa %s1047, 1
    %1049 = vsyncpa [#allocation4], 1
    %s1050 = scalar_lea.sflag [#allocation4], 1
    %1051 = vsyncpa %s1050, 1
    %1052 = vsyncpa [#allocation7], 1
    %s1053 = scalar_lea.sflag [#allocation7], 1
    %1054 = vsyncpa %s1053, 1

</llo_original>
